<compile_context>
chip_gen: v6e
topology: v6e:2x2x1
jax: 0.10.0
libtpu: 0.0.40
codegen_flags: <defaults>
</compile_context>

<pallas_src>
import functools

import numpy as np
import jax
import jax.numpy as jnp
from jax import lax
from jax.experimental import pallas as pl
from jax.experimental.pallas import tpu as pltpu


def make_kernel(k):
    k = np.asarray(k, dtype=np.float32)
    if k.ndim == 1:
        k = k[None, :] * k[:, None]
    k = k / k.sum()
    return k


def _poly_matrix(k1, n_in, n_out, factor, pad0):
    """Banded polyphase matrix M, shape (n_out, n_in).

    M[i, h] = k1[K-1-a] with a = h*factor + pad0 - i when 0 <= a < K, else 0.
    Encodes zero-insertion by `factor`, zero padding, 1-D FIR convolution and the phase
    interleave of the outputs as a single matmul.
    """
    K = k1.shape[0]
    i = np.arange(n_out)[:, None]
    h = np.arange(n_in)[None, :]
    a = h * factor + pad0 - i
    valid = (a >= 0) & (a < K)
    taps = k1[::-1][np.clip(a, 0, K - 1)]
    return np.where(valid, taps, 0.0).astype(np.float32)


def _tile_candidates(total, align, max_tile):
    cands = [d for d in range(align, total, align) if total % d == 0 and d <= max_tile]
    if total <= max_tile:
        cands.append(total)
    cands = sorted(set(cands), reverse=True)
    return cands or [total]


def _band(M, tile, n_tiles, n_in, align):
    """Band width (multiple of `align`, or n_in) and per-tile aligned start offsets such
    that every nonzero contraction entry of output tile t lies in [start[t], start[t]+bw)."""
    if n_in % align != 0:                       # odd input sizes: fall back to dense band
        return n_in, [0] * n_tiles
    lo_al, hi = [], []
    for t in range(n_tiles):
        nz = np.nonzero(np.any(M[t * tile:(t + 1) * tile] != 0.0, axis=0))[0]
        l = int(nz.min()) if nz.size else 0
        h = int(nz.max()) if nz.size else 0
        lo_al.append((l // align) * align)
        hi.append(h)
    width = max(h - l + 1 for h, l in zip(hi, lo_al))
    bw = -(-width // align) * align
    if bw >= n_in:
        return n_in, [0] * n_tiles
    return bw, [min(l, n_in - bw) for l in lo_al]


def _vmem_capacity_bytes():
    try:
        info = pltpu.get_tpu_info()
        cap = int(getattr(info, "vmem_capacity_bytes", 0))
        if cap > 0:
            return cap
    except Exception:
        pass
    return 64 * 1024 * 1024  # conservative default (v7x per-TensorCore VMEM)


def _upsample_kernel(h0_ref, a_ref, b_ref, x_ref, o_ref, *,
                     tb, hb, tw, n_tw, wb, w_starts):
    # h0_ref : SMEM (n_th,) int32   per-row-tile input band start (multiple of 8)
    # a_ref  : (TH, HB)     bf16    banded vertical polyphase taps for this row tile
    # b_ref  : (WB, out_w)  bf16    banded horizontal taps (resident across steps)
    # x_ref  : (TB, H, W)   f32     compact input planes (resident across row tiles)
    # o_ref  : (TB, TH, out_w)
    j = pl.program_id(1)
    h0 = pl.multiple_of(h0_ref[j], 8)
    A = a_ref[...]                                                   # (TH, HB) bf16

    @pl.loop(0, tb)                                                  # bounds live ranges
    def _(t):
        xs = x_ref[t, pl.ds(h0, hb), :].astype(jnp.bfloat16)         # (HB, W)
        tmp = jnp.dot(A, xs, preferred_element_type=jnp.float32)     # (TH, W)  vertical pass
        tmp = tmp.astype(jnp.bfloat16)
        for c in range(n_tw):                                        # static, small
            w0 = w_starts[c]
            yc = jnp.dot(tmp[:, w0:w0 + wb], b_ref[:, pl.ds(c * tw, tw)],
                         preferred_element_type=jnp.float32)         # (TH, TW) horiz + interleave
            o_ref[t, :, pl.ds(c * tw, tw)] = yc.astype(o_ref.dtype)


class UpsamplePallas:
    """Pallas-TPU equivalent of the PyTorch Upsample module (upfirdn2d, up=factor, down=1)."""

    def __init__(self, kernel, factor=2, *, max_th=512, max_tw=512, max_tb=8):
        k = np.asarray(kernel, dtype=np.float32)
        if k.ndim != 1:
            # TODO(synk): non-separable 2-D FIR kernels need a direct (non rank-1) polyphase path.
            raise NotImplementedError("UpsamplePallas supports 1-D separable FIR kernels")
        self.factor = int(factor)
        self.k1 = (k / k.sum()) * self.factor              # 1-D factor of make_kernel(k)*factor**2
        self.kernel = make_kernel(k) * self.factor ** 2    # (K, K), for the reference check
        self.ksize = int(k.shape[0])
        p = self.ksize - self.factor
        self.pad = ((p + 1) // 2 + self.factor - 1, p // 2)
        self.max_th, self.max_tw, self.max_tb = int(max_th), int(max_tw), int(max_tb)

    def __call__(self, x):
        f, K = self.factor, self.ksize
        pad0, pad1 = self.pad
        N, C, H, W = x.shape
        NC = N * C
        out_h = H * f + pad0 + pad1 - K + 1
        out_w = W * f + pad0 + pad1 - K + 1
        itemsize = jnp.dtype(x.dtype).itemsize

        # Banded polyphase matrices (trace-time numpy; passed as runtime inputs).
        A_full = _poly_matrix(self.k1, H, out_h, f, pad0)         # (out_h, H)
        B_full = _poly_matrix(self.k1, W, out_w, f, pad0).T       # (W, out_w)

        # ---- generation-aware tiling --------------------------------------------------
        vmem_cap = _vmem_capacity_bytes()                 # 128 MiB v5e/v6e, 64 MiB v7x
        budget = int(vmem_cap * 0.40)                     # fit-model target, leaves headroom
        vmem_limit = int(vmem_cap * 0.75)

        TW = _tile_candidates(out_w, 128, self.max_tw)[0]           # 128-aligned or full out_w
        n_tw = out_w // TW
        WB, w0s = _band(B_full.T, TW, n_tw, W, 128)                 # horizontal band of B

        def fits(tb, th, hb):
            by = 2 * tb * H * W * itemsize          # x blocks (double buffered)
            by += 2 * th * hb * 2                   # A blocks (bf16)
            by += 2 * WB * out_w * 2                # B blocks (bf16)
            by += 2 * tb * th * out_w * itemsize    # output blocks
            by += hb * W * (itemsize + 2)           # xs load + bf16 cast (one plane live)
            by += th * W * (4 + 2)                  # tmp f32 + bf16
            by += th * TW * 4                       # yc
            return by <= budget

        TH = HB = h0s = None
        th_cands = _tile_candidates(out_h, 8, self.max_th)
        for cand in th_cands:
            hb_c, h0_c = _band(A_full, cand, out_h // cand, H, 8)
            if fits(1, cand, hb_c):
                TH, HB, h0s = cand, hb_c, h0_c
                break
        if TH is None:
            # TODO(synk): planes too large even for the smallest row tile (x plane itself
            # exceeds the budget) would need H-tiled x blocks with halo DMA.
            TH = th_cands[-1]
            HB, h0s = _band(A_full, TH, out_h // TH, H, 8)
        n_th = out_h // TH

        TB = 1
        for d in range(2, min(NC, self.max_tb) + 1):
            if NC % d == 0 and fits(d, TH, HB):
                TB = d

        # ---- banded operand layouts ---------------------------------------------------
        A_stack = np.zeros((out_h, HB), np.float32)
        for j in range(n_th):
            A_stack[j * TH:(j + 1) * TH] = A_full[j * TH:(j + 1) * TH, h0s[j]:h0s[j] + HB]
        B_stack = np.zeros((WB, out_w), np.float32)
        for c in range(n_tw):
            B_stack[:, c * TW:(c + 1) * TW] = B_full[w0s[c]:w0s[c] + WB, c * TW:(c + 1) * TW]

        kernel_fn = functools.partial(
            _upsample_kernel, tb=TB, hb=HB, tw=TW, n_tw=n_tw, wb=WB, w_starts=tuple(w0s))

        flops = 2 * NC * (out_h * HB * W + out_h * WB * out_w)
        bytes_accessed = (NC * (H * W + out_h * out_w) * itemsize
                          + (NC // TB) * out_h * HB * 2 + WB * out_w * 2)

        out = pl.pallas_call(
            kernel_fn,
            out_shape=jax.ShapeDtypeStruct((NC, out_h, out_w), x.dtype),
            grid_spec=pltpu.PrefetchScalarGridSpec(
                num_scalar_prefetch=1,
                grid=(NC // TB, n_th),                                    # row tiles innermost
                in_specs=[
                    pl.BlockSpec((TH, HB), lambda i, j, h0: (j, 0)),      # banded A row tile
                    pl.BlockSpec((WB, out_w), lambda i, j, h0: (0, 0)),   # banded B, resident
                    pl.BlockSpec((TB, H, W), lambda i, j, h0: (i, 0, 0)), # x resident across j
                ],
                out_specs=pl.BlockSpec((TB, TH, out_w), lambda i, j, h0: (i, j, 0)),
            ),
            compiler_params=pltpu.CompilerParams(
                dimension_semantics=("parallel", "parallel"),
                vmem_limit_bytes=vmem_limit),
            cost_estimate=pl.CostEstimate(
                flops=int(flops), transcendentals=0, bytes_accessed=int(bytes_accessed)),
        )(jnp.asarray(np.asarray(h0s, dtype=np.int32)),
          jnp.asarray(A_stack).astype(jnp.bfloat16),
          jnp.asarray(B_stack).astype(jnp.bfloat16),
          x.reshape(NC, H, W))

        return out.reshape(N, C, out_h, out_w)


def _reference_upsample(x, kernel2d, factor, pad):
    # Independent reference: lax.conv_general_dilated (lhs_dilation == zero-insert upsample).
    kh, kw = kernel2d.shape
    pad0, pad1 = pad
    N, C, H, W = x.shape
    x2 = x.reshape(N * C, 1, H, W)
    w = jnp.flip(jnp.asarray(kernel2d), (0, 1)).reshape(1, 1, kh, kw)
    out = jax.lax.conv_general_dilated(
        x2, w,
        window_strides=(1, 1),
        padding=((pad0, pad1 + factor - 1), (pad0, pad1 + factor - 1)),
        lhs_dilation=(factor, factor),
        dimension_numbers=("NCHW", "OIHW", "NCHW"),
        precision=jax.lax.Precision.HIGHEST,
    )
    return out.reshape(N, C, out.shape[2], out.shape[3])


if __name__ == "__main__":
    key0, key1 = jax.random.split(jax.random.PRNGKey(0))

    # Test 1: the module-spec small shapes (single dense tile, TB>1 exercises the plane loop).
    N, C, H, W = 2, 4, 16, 16
    x = jax.random.normal(key0, (N, C, H, W), dtype=jnp.float32)
    mod = UpsamplePallas(kernel=[1, 3, 3, 1], factor=2)
    y = jax.block_until_ready(mod(x))
    assert y.shape == (N, C, H * 2, W * 2), y.shape
    y_ref = jax.block_until_ready(_reference_upsample(x, mod.kernel, mod.factor, mod.pad))
    # bf16 MXU operands (1-pass) vs f32 HIGHEST reference -> ~1e-3 relative error expected.
    np.testing.assert_allclose(np.asarray(y), np.asarray(y_ref), rtol=5e-2, atol=5e-2)

    # Test 2: force row/column tiling so the banded code paths (TH<out_h, WB<W, dynamic
    # band starts, multiple column tiles) actually run on hardware.
    x2 = jax.random.normal(key1, (1, 2, 32, 512), dtype=jnp.float32)
    mod2 = UpsamplePallas(kernel=[1, 3, 3, 1], factor=2, max_th=16, max_tw=128, max_tb=2)
    y2 = jax.block_until_ready(mod2(x2))
    assert y2.shape == (1, 2, 64, 1024), y2.shape
    y2_ref = jax.block_until_ready(_reference_upsample(x2, mod2.kernel, mod2.factor, mod2.pad))
    np.testing.assert_allclose(np.asarray(y2), np.asarray(y2_ref), rtol=5e-2, atol=5e-2)

    print("KERNEL_OK")
</pallas_src>

<mosaic_0001>
module attributes {stable_mosaic.version = 11 : i64} {
  func.func @_upsample_kernel(%arg0: i32, %arg1: i32, %arg2: memref<1xi32, #tpu.memory_space<smem>>, %arg3: memref<32x16xbf16, #tpu.memory_space<vmem>>, %arg4: memref<16x32xbf16, #tpu.memory_space<vmem>>, %arg5: memref<8x16x16xf32, #tpu.memory_space<vmem>>, %arg6: memref<8x32x32xf32, #tpu.memory_space<vmem>>) attributes {dimension_semantics = [#tpu.dimension_semantics<parallel>, #tpu.dimension_semantics<parallel>], iteration_bounds = array<i64: 1, 1>, scalar_prefetch = 1 : i64, scratch_operands = 0 : i64, tpu.core_type = #tpu.core_type<tc>, window_params = [{transform_indices = @transform_0, window_bounds = array<i64: 32, 16>}, {pipeline_mode = #tpu.pipeline_mode<synchronous>, transform_indices = @transform_1, window_bounds = array<i64: 16, 32>}, {transform_indices = @transform_2, window_bounds = array<i64: 8, 16, 16>}, {transform_indices = @transform_3, window_bounds = array<i64: 8, 32, 32>}]} {
    %0 = arith.index_cast %arg1 : i32 to index
    %1 = memref.load %arg2[%0] : memref<1xi32, #tpu.memory_space<smem>>
    %2 = tpu.assume_multiple %1, 8 : i32
    %c0 = arith.constant 0 : index
    %c0_0 = arith.constant 0 : index
    %3 = vector.load %arg3[%c0, %c0_0] : memref<32x16xbf16, #tpu.memory_space<vmem>>, vector<32x16xbf16>
    %c0_i32 = arith.constant 0 : i32
    %c8_i32 = arith.constant 8 : i32
    %4 = arith.addi %c0_i32, %c8_i32 : i32
    %c1_i32 = arith.constant 1 : i32
    scf.for %arg7 = %c0_i32 to %4 step %c1_i32  : i32 {
      %c1_i32_2 = arith.constant 1 : i32
      %5 = arith.muli %arg7, %c1_i32_2 : i32
      %c0_i32_3 = arith.constant 0 : i32
      %6 = arith.addi %c0_i32_3, %5 : i32
      %7 = arith.index_cast %6 : i32 to index
      %8 = arith.index_cast %2 : i32 to index
      %c0_4 = arith.constant 0 : index
      %9 = vector.load %arg5[%7, %8, %c0_4] : memref<8x16x16xf32, #tpu.memory_space<vmem>>, vector<1x16x16xf32>
      %10 = vector.shape_cast %9 : vector<1x16x16xf32> to vector<16x16xf32>
      %11 = arith.truncf %10 : vector<16x16xf32> to vector<16x16xbf16>
      %cst = arith.constant dense<0.000000e+00> : vector<32x16xf32>
      %12 = tpu.matmul %3, %11, %cst {dimension_numbers = #tpu.dot_dimension_numbers<[1], [0], [0], [1], [0, 0, 1, 1], [], []>} : vector<32x16xbf16>, vector<16x16xbf16>, vector<32x16xf32> -> vector<32x16xf32>
      %13 = arith.truncf %12 : vector<32x16xf32> to vector<32x16xbf16>
      %c0_5 = arith.constant 0 : index
      %c0_6 = arith.constant 0 : index
      %14 = vector.load %arg4[%c0_5, %c0_6] : memref<16x32xbf16, #tpu.memory_space<vmem>>, vector<16x32xbf16>
      %cst_7 = arith.constant dense<0.000000e+00> : vector<32x32xf32>
      %15 = tpu.matmul %13, %14, %cst_7 {dimension_numbers = #tpu.dot_dimension_numbers<[1], [0], [0], [1], [0, 0, 1, 1], [], []>} : vector<32x16xbf16>, vector<16x32xbf16>, vector<32x32xf32> -> vector<32x32xf32>
      %16 = arith.index_cast %6 : i32 to index
      %c0_8 = arith.constant 0 : index
      %c0_9 = arith.constant 0 : index
      %17 = vector.load %arg6[%16, %c0_8, %c0_9] : memref<8x32x32xf32, #tpu.memory_space<vmem>>, vector<1x32x32xf32>
      %18 = vector.shape_cast %17 : vector<1x32x32xf32> to vector<32x32xf32>
      %19 = vector.shape_cast %15 : vector<32x32xf32> to vector<1x32x32xf32>
      tpu.vector_store %arg6[%16, %c0_8, %c0_9], %19 {strides = array<i32>} : memref<8x32x32xf32, #tpu.memory_space<vmem>>, vector<1x32x32xf32>,
    }
    %c8_i32_1 = arith.constant 8 : i32
    return
  }
  func.func @transform_0(%arg0: i32, %arg1: i32, %arg2: memref<1xi32, #tpu.memory_space<smem>>) -> (i32, i32) {
    %c0_i32 = arith.constant 0 : i32
    %c0_i32_0 = arith.constant 0 : i32
    return %arg1, %c0_i32 : i32, i32
  }
  func.func @transform_1(%arg0: i32, %arg1: i32, %arg2: memref<1xi32, #tpu.memory_space<smem>>) -> (i32, i32) {
    %c0_i32 = arith.constant 0 : i32
    %c0_i32_0 = arith.constant 0 : i32
    %c0_i32_1 = arith.constant 0 : i32
    return %c0_i32, %c0_i32_0 : i32, i32
  }
  func.func @transform_2(%arg0: i32, %arg1: i32, %arg2: memref<1xi32, #tpu.memory_space<smem>>) -> (i32, i32, i32) {
    %c0_i32 = arith.constant 0 : i32
    %c0_i32_0 = arith.constant 0 : i32
    %c0_i32_1 = arith.constant 0 : i32
    return %arg0, %c0_i32, %c0_i32_0 : i32, i32, i32
  }
  func.func @transform_3(%arg0: i32, %arg1: i32, %arg2: memref<1xi32, #tpu.memory_space<smem>>) -> (i32, i32, i32) {
    %c0_i32 = arith.constant 0 : i32
    %c0_i32_0 = arith.constant 0 : i32
    return %arg0, %arg1, %c0_i32 : i32, i32, i32
  }
}

</mosaic_0001>

<llo_original>
// kernel: tpu_custom_call.1
$region0: #{tpu_custom_call.1}
  #allocation0 [shape = 'u32[]', space=smem, size = 0x4, offset = 0x4, fixed_abs, tag = 'smem constant byte address 0x4 - core index']
  #allocation1 [shape = 'u32[144,128]{1,0:T(1,128)}', space=vmem, size = 0x12000, scoped, tag = 'internal scratch']
  #allocation2 [shape = 's32[1]{0}', space=sflag, size = 0x4, scoped, tag = 'scoped memory for tpu_custom_call.1']
  #allocation3 [shape = 's32[1]{0:T(128)S(6)}', space=smem, size = 0x200, scoped, tag = 'prefetched SMEM operand 0']
  %s0 = inlined_call_operand.<no memory space> [shape: s32[1], index: 0, kind: input, shape index: {}]
  %s1 = inlined_call_operand.vmem [shape: bf16[32,16], index: 1, kind: input, shape index: {}]
  %s2 = inlined_call_operand.vmem [shape: bf16[16,32], index: 2, kind: input, shape index: {}]
  %s3 = inlined_call_operand.hbm [shape: f32[8,16,16], index: 3, kind: input, shape index: {}]
  %s4 = inlined_call_operand.hbm [shape: f32[8,32,32], index: 4, kind: output, shape index: {}]
  %s5 = sld [smem:[#allocation0]]
  $region33: #{tpu_custom_call.1} parent=0
    _
  %s7 = ssub.s32 1, %s5
  %s8 = scalar_select 0, %s7, %s5
  %9 = sst [smem:[#allocation3]] %s0
  $region1: #{tpu_custom_call.1} parent=0
    #allocation4 [shape = 'u8[65536]{0}', space=vmem, size = 0x10000, scoped, tag = 'input window, operand 3, single buffered']
    #allocation5 [shape = 's32[1]{0}', space=sflag, size = 0x4, scoped, tag = 'scoped memory for tpu_custom_call.1']
    #allocation6 [shape = 's32[1]{0}', space=sflag, size = 0x4, scoped, tag = 'scoped memory for tpu_custom_call.1']
    #allocation7 [shape = 'u8[131072]{0}', space=vmem, size = 0x20000, scoped, tag = 'output window, operand 0, single buffered']
    %10 = vsyncpa [#allocation5], 0
    %11 = vsyncpa [#allocation6], 0
    // Predicated region
    $region2: #{tpu_custom_call.1} parent=1 // pred_check
      _
    $region3: #{tpu_custom_call.1} parent=1 // pred_check_branch
      %13 = sbr.rel (0) target = $region5
    $region4: #{tpu_custom_call.1} parent=1 // pred_region
      _
    $region5: #{tpu_custom_call.1} parent=1 // pred_fallthru
      _
    // Predicated region
    $region6: #{tpu_custom_call.1} parent=1 // pred_check
      _
    $region7: #{tpu_custom_call.1} parent=1 // pred_check_branch
      %15 = sbr.rel (0) target = $region9
    $region8: #{tpu_custom_call.1} parent=1 // pred_region
      _
    $region9: #{tpu_custom_call.1} parent=1 // pred_fallthru
      _
    // Predicated region
    $region10: #{tpu_custom_call.1} parent=1 // pred_check
      _
    $region11: #{tpu_custom_call.1} parent=1 // pred_check_branch
      %17 = sbr.rel (0) target = $region13
    $region12: #{tpu_custom_call.1} parent=1 // pred_region
      %s19 = ssub.s32 2048, 2048
      %20 = vsyncadd [#allocation5], %s19
      %s21 = sshll.u32 [#allocation4], 4
      %s22 = int_to_ptr.vmem [resolvable:$true] %s21
      %27 = dma.hbm_to_vmem [thread:$0]  %s3, 2048, %s22, [#allocation5], 128, 128, 8
    $region13: #{tpu_custom_call.1} parent=1 // pred_fallthru
      _
    // Predicated region
    $region14: #{tpu_custom_call.1} parent=1 // pred_check
      _
    $region15: #{tpu_custom_call.1} parent=1 // pred_check_branch
      %29 = sbr.rel (0) target = $region17
    $region16: #{tpu_custom_call.1} parent=1 // pred_region
      %30 = dma.done [#allocation5], 2048
    $region17: #{tpu_custom_call.1} parent=1 // pred_fallthru
      _
    %s32 = sld [smem:[#allocation3]]
    %v33 = vld [vmem:[%s1] sm:$0xf]
    %v34 = vld [vmem:[%s1 + $0x4] sm:$0xf]
    %v35 = vld [vmem:[%s1 + $0x8] sm:$0xf]
    %v36 = vld [vmem:[%s1 + $0xc] sm:$0xf]
    loop: start=0, step=1, limit=8
    $region18: #{tpu_custom_call.1} parent=1 // loop_pre_header
      _
    $region19: #{tpu_custom_call.1} parent=1 // loop_header
      %s38 = sphi 0, %s42
      %p39 = scmp.ge.s32.totalorder %s38, 8
    $region20: #{tpu_custom_call.1} parent=1 // loop_header_branch
      %41 = sbr.rel (%p39) target = $region24
    $region21: #{tpu_custom_call.1} parent=1 // loop_body
      %s43 = smul.u32 %s38, 16
      %s44 = sadd.s32 %s32, %s43
      %s45 = scalar_lea.vmem [#allocation4], %s44
      %v46 = vld [vmem:[%s45] sm:$0xff]
      %v47 = vld [vmem:[%s45 + $0x8] sm:$0xff]
      %v48 = vpack.c.bf16 %v47, %v46
      %v53 = vunpack.c.l.b16 %v33
      %v54 = vunpack.c.l.b16 %v34
      %v55 = vunpack.c.l.b16 %v35
      %v56 = vunpack.c.l.b16 %v36
      %v57 = vpack.c.b16 %v54, %v53
      %v58 = vpack.c.b16 %v56, %v55
      %vm59 = vcmask 130048
      %v61 = vsel %vm59, %v57, 0
      %v64 = vsel %vm59, %v58, 0
      %66 = vmatprep.subr.bf16.mxu0 0
      %67 = vmatpush1.bf16.msra.mxu0 0
      %68 = vmatprep.subr.bf16.mxu0 0
      %69 = vmatpush1.bf16.msra.mxu0 0
      %70 = vmatprep.subr.bf16.mxu0 0
      %71 = vmatpush1.bf16.msra.mxu0 0
      %72 = vmatprep.subr.bf16.mxu0 0
      %73 = vmatpush1.bf16.msra.mxu0 0
      %74 = vmatprep.subr.bf16.mxu0 0
      %75 = vmatpush1.bf16.msra.mxu0 0
      %76 = vmatprep.subr.bf16.mxu0 0
      %77 = vmatpush1.bf16.msra.mxu0 0
      %78 = vmatprep.subr.bf16.mxu0 0
      %79 = vmatpush1.bf16.msra.mxu0 0
      %80 = vmatprep.subr.bf16.mxu0 0
      %81 = vmatpush1.bf16.msra.mxu0 %v48
      %82 = vmatprep.subr.bf16.mxu0 0
      %83 = vmatpush2.bf16.msra.mxu0 0
      %84 = vmatprep.subr.bf16.mxu0 0
      %85 = vmatpush2.bf16.msra.mxu0 0
      %86 = vmatprep.subr.bf16.mxu0 0
      %87 = vmatpush2.bf16.msra.mxu0 0
      %88 = vmatprep.subr.bf16.mxu0 0
      %89 = vmatpush2.bf16.msra.mxu0 0
      %90 = vmatprep.subr.bf16.mxu0 0
      %91 = vmatpush2.bf16.msra.mxu0 0
      %92 = vmatprep.subr.bf16.mxu0 0
      %93 = vmatpush2.bf16.msra.mxu0 0
      %94 = vmatprep.subr.bf16.mxu0 0
      %95 = vmatpush2.bf16.msra.mxu0 0
      %96 = vmatprep.subr.bf16.mxu0 0
      %97 = vmatpush2.bf16.msra.mxu0 0
      %98 = vmatprep.mubr.bf16.mxu0 0
      %99 = vmatmul.mubr.bf16.gmra.mxu0 %v61
      %v100 = vpop.f32.mrf.mxu0
      %v101 = vadd.f32 0.0, %v100
      %v102 = vpop.f32.mrf.mxu0
      %v103 = vpop.f32.mrf.mxu0
      %v104 = vadd.f32 0.0, %v103
      %v105 = vpop.f32.mrf.mxu0
      %106 = vmatprep.mubr.bf16.mxu0 0
      %107 = vmatmul.mubr.bf16.gmra.mxu0 %v64
      %v108 = vpop.f32.mrf.mxu0
      %v109 = vadd.f32 0.0, %v108
      %v110 = vpop.f32.mrf.mxu0
      %v111 = vpop.f32.mrf.mxu0
      %v112 = vadd.f32 0.0, %v111
      %v113 = vpop.f32.mrf.mxu0
      %114 = vdwg.mxu0
      %v115 = vpack.c.bf16 %v104, %v101
      %v116 = vpack.c.bf16 %v112, %v109
      %v117 = vld [vmem:[%s2] sm:$0xf]
      %v118 = vld [vmem:[%s2 + $0x4] sm:$0xf]
      %v121 = vunpack.c.l.b16 %v117
      %v122 = vunpack.c.l.b16 %v118
      %v123 = vpack.c.b16 %v122, %v121
      %v126 = vsel %vm59, %v115, 0
      %v129 = vsel %vm59, %v116, 0
      %131 = vmatprep.subr.bf16.mxu0 0
      %132 = vmatpush1.bf16.msra.mxu0 0
      %133 = vmatprep.subr.bf16.mxu0 0
      %134 = vmatpush1.bf16.msra.mxu0 0
      %135 = vmatprep.subr.bf16.mxu0 0
      %136 = vmatpush1.bf16.msra.mxu0 0
      %137 = vmatprep.subr.bf16.mxu0 0
      %138 = vmatpush1.bf16.msra.mxu0 0
      %139 = vmatprep.subr.bf16.mxu0 0
      %140 = vmatpush1.bf16.msra.mxu0 0
      %141 = vmatprep.subr.bf16.mxu0 0
      %142 = vmatpush1.bf16.msra.mxu0 0
      %143 = vmatprep.subr.bf16.mxu0 0
      %144 = vmatpush1.bf16.msra.mxu0 0
      %145 = vmatprep.subr.bf16.mxu0 0
      %146 = vmatpush1.bf16.msra.mxu0 %v123
      %147 = vmatprep.subr.bf16.mxu0 0
      %148 = vmatpush2.bf16.msra.mxu0 0
      %149 = vmatprep.subr.bf16.mxu0 0
      %150 = vmatpush2.bf16.msra.mxu0 0
      %151 = vmatprep.subr.bf16.mxu0 0
      %152 = vmatpush2.bf16.msra.mxu0 0
      %153 = vmatprep.subr.bf16.mxu0 0
      %154 = vmatpush2.bf16.msra.mxu0 0
      %155 = vmatprep.subr.bf16.mxu0 0
      %156 = vmatpush2.bf16.msra.mxu0 0
      %157 = vmatprep.subr.bf16.mxu0 0
      %158 = vmatpush2.bf16.msra.mxu0 0
      %159 = vmatprep.subr.bf16.mxu0 0
      %160 = vmatpush2.bf16.msra.mxu0 0
      %161 = vmatprep.subr.bf16.mxu0 0
      %162 = vmatpush2.bf16.msra.mxu0 0
      %163 = vmatprep.mubr.bf16.mxu0 0
      %164 = vmatmul.mubr.bf16.gmra.mxu0 %v126
      %v165 = vpop.f32.mrf.mxu0
      %v166 = vadd.f32 0.0, %v165
      %v167 = vpop.f32.mrf.mxu0
      %v168 = vpop.f32.mrf.mxu0
      %v169 = vadd.f32 0.0, %v168
      %v170 = vpop.f32.mrf.mxu0
      %171 = vmatprep.mubr.bf16.mxu0 0
      %172 = vmatmul.mubr.bf16.gmra.mxu0 %v129
      %v173 = vpop.f32.mrf.mxu0
      %v174 = vadd.f32 0.0, %v173
      %v175 = vpop.f32.mrf.mxu0
      %v176 = vpop.f32.mrf.mxu0
      %v177 = vadd.f32 0.0, %v176
      %v178 = vpop.f32.mrf.mxu0
      %179 = vdwg.mxu0
      %s180 = smul.u32 %s38, 32
      %s181 = scalar_lea.vmem [#allocation7], %s180
      %vm182 = vcmask 261120
      %183 = vst.msk [vmem:[%s181] sm:$0xff] %vm182, %v166
      %184 = vst.msk [vmem:[%s181 + $0x8] sm:$0xff] %vm182, %v169
      %185 = vst.msk [vmem:[%s181 + $0x10] sm:$0xff] %vm182, %v174
      %186 = vst.msk [vmem:[%s181 + $0x18] sm:$0xff] %vm182, %v177
    $region22: #{tpu_custom_call.1} parent=1 // loop_footer
      %s42 = sadd.s32 1, %s38
    $region23: #{tpu_custom_call.1} parent=1 // loop_footer_branch
      %37 = sbr.rel target = $region19
    $region24: #{tpu_custom_call.1} parent=1 // loop_exit
      _
    // Predicated region
    $region25: #{tpu_custom_call.1} parent=1 // pred_check
      _
    $region26: #{tpu_custom_call.1} parent=1 // pred_check_branch
      %188 = sbr.rel (0) target = $region28
    $region27: #{tpu_custom_call.1} parent=1 // pred_region
      %s190 = ssub.s32 4096, 4096
      %191 = vsyncadd [#allocation6], %s190
      %s192 = sshll.u32 [#allocation7], 4
      %s193 = int_to_ptr.vmem [resolvable:$true] %s192
      %198 = dma.vmem_to_hbm [thread:$0]  %s193, 4096, %s4, [#allocation6], 128, 128, 8
    $region28: #{tpu_custom_call.1} parent=1 // pred_fallthru
      _
    // Predicated region
    $region29: #{tpu_custom_call.1} parent=1 // pred_check
      _
    $region30: #{tpu_custom_call.1} parent=1 // pred_check_branch
      %200 = sbr.rel (0) target = $region32
    $region31: #{tpu_custom_call.1} parent=1 // pred_region
      %201 = dma.done [#allocation6], 4096
    $region32: #{tpu_custom_call.1} parent=1 // pred_fallthru
      _
    %202 = vsyncpa [#allocation5], 1
    %203 = vsyncpa [#allocation6], 1

</llo_original>
